<compile_context>
chip_gen: v6e
topology: v6e:2x2x1
jax: 0.10.0
libtpu: 0.0.40
codegen_flags: <defaults>
</compile_context>

<pallas_src>
import functools

import jax
import jax.numpy as jnp
from jax.experimental import pallas as pl
from jax.experimental.pallas import tpu as pltpu


def _round_up(x, m):
    return (x + m - 1) // m * m


def fusion_attention_kernel(t_ref, s_ref, wv_ref, bv_ref, o_ref):
    # softmax over the singleton last axis is identically 1.0, so
    #   fused = t + 1.0 * (s @ Wv + bv)
    # (q/k projections, the cross-lane reduce and the exp are dead compute).
    t = t_ref[...]
    v = jnp.dot(s_ref[...], wv_ref[...], preferred_element_type=jnp.float32)
    o_ref[...] = (t + v + bv_ref[...]).astype(o_ref.dtype)


@functools.partial(jax.jit, static_argnames=("tile_m",))
def fusion_attention(temporal_feat, spatial_feat, params, *, tile_m=256):
    """temporal_feat / spatial_feat: (B, S, D) float32."""
    B, S, D = temporal_feat.shape
    N = B * S

    # Pre-transposed value weight (D_in, D_out); folded by XLA under jit
    # (no per-call HBM transpose in the hot path).
    wv_t = params["wv"].T
    bv = params["bv"]

    # Lane packing factor: pack p consecutive rows into one 128-lane row.
    p = 128 // D if (D < 128 and 128 % D == 0) else 1
    Dp = D * p

    # Block-diagonal weight / tiled bias act on the packed layout.
    if p > 1:
        w_blk = jnp.kron(jnp.eye(p, dtype=wv_t.dtype), wv_t)   # (Dp, Dp)
        b_blk = jnp.tile(bv, p).reshape(1, Dp)
    else:
        w_blk = wv_t
        b_blk = bv.reshape(1, Dp)

    t2 = temporal_feat.reshape(N, D)
    s2 = spatial_feat.reshape(N, D)

    # Pad rows so the packed row count is a multiple of tile_m (padded zero
    # rows are computed but sliced off; cheap vs tiny-tile grid overhead).
    n_pack_raw = -(-N // p)                                  # cdiv(N, p)
    tile_m = max(8, min(tile_m, _round_up(n_pack_raw, 8)))   # shrink for tiny N
    n_pack = _round_up(n_pack_raw, tile_m)
    n_rows = n_pack * p
    pad = n_rows - N
    if pad:
        t2 = jnp.pad(t2, ((0, pad), (0, 0)))
        s2 = jnp.pad(s2, ((0, pad), (0, 0)))

    t_pk = t2.reshape(n_pack, Dp)          # contiguous reshape, lane-dense
    s_pk = s2.reshape(n_pack, Dp)

    row_spec = pl.BlockSpec((tile_m, Dp), lambda i: (i, 0))
    w_spec = pl.BlockSpec((Dp, Dp), lambda i: (0, 0))
    b_spec = pl.BlockSpec((1, Dp), lambda i: (0, 0))

    out_pk = pl.pallas_call(
        fusion_attention_kernel,
        out_shape=jax.ShapeDtypeStruct((n_pack, Dp), temporal_feat.dtype),
        grid_spec=pltpu.PrefetchScalarGridSpec(
            num_scalar_prefetch=0,
            grid=(n_pack // tile_m,),
            in_specs=[row_spec, row_spec, w_spec, b_spec],
            out_specs=row_spec,
        ),
        compiler_params=pltpu.CompilerParams(
            dimension_semantics=("parallel",)),
    )(t_pk, s_pk, w_blk, b_blk)

    out = out_pk.reshape(n_rows, D)[:N]
    return out.reshape(B, S, D)


def init_params(d_model, key):
    """Deterministic init (PyTorch nn.Linear shapes: W (out,in), b (out,))."""
    ks = jax.random.split(key, 6)
    bound = 1.0 / jnp.sqrt(d_model)

    def u(k, shape):
        return jax.random.uniform(k, shape, jnp.float32, -bound, bound)

    return {
        "wq": u(ks[0], (d_model, d_model)), "bq": u(ks[1], (d_model,)),
        "wk": u(ks[2], (d_model, d_model)), "bk": u(ks[3], (d_model,)),
        "wv": u(ks[4], (d_model, d_model)), "bv": u(ks[5], (d_model,)),
    }


def fusion_attention_ref(temporal_feat, spatial_feat, params):
    """Full reference of the PyTorch module (including the dead q/k path)."""
    q = temporal_feat @ params["wq"].T + params["bq"]
    k = spatial_feat @ params["wk"].T + params["bk"]
    v = spatial_feat @ params["wv"].T + params["bv"]
    score = jnp.sum(q * k, axis=-1, keepdims=True)
    attn = jax.nn.softmax(score, axis=-1)   # == 1.0 on the singleton axis
    return temporal_feat + attn * v


if __name__ == "__main__":
    B, S, D = 2, 8, 32
    key = jax.random.PRNGKey(0)
    k_t, k_s, k_p = jax.random.split(key, 3)

    temporal = jax.random.normal(k_t, (B, S, D), jnp.float32)
    spatial = jax.random.normal(k_s, (B, S, D), jnp.float32)
    params = init_params(D, k_p)

    out = fusion_attention(temporal, spatial, params)
    out = jax.block_until_ready(out)

    ref = fusion_attention_ref(temporal, spatial, params)
    assert out.shape == (B, S, D)
    assert jnp.allclose(out, ref, atol=1e-5, rtol=1e-5), "mismatch vs reference"

    print("KERNEL_OK")
</pallas_src>

<mosaic_0001>
module attributes {stable_mosaic.version = 11 : i64} {
  func.func @fusion_attention_kernel(%arg0: i32, %arg1: memref<8x128xf32, #tpu.memory_space<vmem>>, %arg2: memref<8x128xf32, #tpu.memory_space<vmem>>, %arg3: memref<128x128xf32, #tpu.memory_space<vmem>>, %arg4: memref<1x128xf32, #tpu.memory_space<vmem>>, %arg5: memref<8x128xf32, #tpu.memory_space<vmem>>) attributes {dimension_semantics = [#tpu.dimension_semantics<parallel>], iteration_bounds = array<i64: 1>, scalar_prefetch = 0 : i64, scratch_operands = 0 : i64, tpu.core_type = #tpu.core_type<tc>, window_params = [{transform_indices = @transform_0, window_bounds = array<i64: 8, 128>}, {transform_indices = @transform_1, window_bounds = array<i64: 8, 128>}, {pipeline_mode = #tpu.pipeline_mode<synchronous>, transform_indices = @transform_2, window_bounds = array<i64: 128, 128>}, {pipeline_mode = #tpu.pipeline_mode<synchronous>, transform_indices = @transform_3, window_bounds = array<i64: 1, 128>}, {transform_indices = @transform_4, window_bounds = array<i64: 8, 128>}]} {
    %c0 = arith.constant 0 : index
    %c0_0 = arith.constant 0 : index
    %0 = vector.load %arg1[%c0, %c0_0] : memref<8x128xf32, #tpu.memory_space<vmem>>, vector<8x128xf32>
    %c0_1 = arith.constant 0 : index
    %c0_2 = arith.constant 0 : index
    %1 = vector.load %arg2[%c0_1, %c0_2] : memref<8x128xf32, #tpu.memory_space<vmem>>, vector<8x128xf32>
    %c0_3 = arith.constant 0 : index
    %c0_4 = arith.constant 0 : index
    %2 = vector.load %arg3[%c0_3, %c0_4] : memref<128x128xf32, #tpu.memory_space<vmem>>, vector<128x128xf32>
    %cst = arith.constant dense<0.000000e+00> : vector<8x128xf32>
    %3 = tpu.matmul %1, %2, %cst {dimension_numbers = #tpu.dot_dimension_numbers<[1], [0], [0], [1], [0, 0, 1, 1], [], []>} : vector<8x128xf32>, vector<128x128xf32>, vector<8x128xf32> -> vector<8x128xf32>
    %4 = arith.addf %0, %3 : vector<8x128xf32>
    %c0_5 = arith.constant 0 : index
    %c0_6 = arith.constant 0 : index
    %5 = vector.load %arg4[%c0_5, %c0_6] : memref<1x128xf32, #tpu.memory_space<vmem>>, vector<1x128xf32>
    %6 = vector.broadcast %5 : vector<1x128xf32> to vector<8x128xf32>
    %7 = arith.addf %4, %6 : vector<8x128xf32>
    %c0_7 = arith.constant 0 : index
    %c0_8 = arith.constant 0 : index
    %8 = vector.load %arg5[%c0_7, %c0_8] : memref<8x128xf32, #tpu.memory_space<vmem>>, vector<8x128xf32>
    tpu.vector_store %arg5[%c0_7, %c0_8], %7 {strides = array<i32>} : memref<8x128xf32, #tpu.memory_space<vmem>>, vector<8x128xf32>,
    return
  }
  func.func @transform_0(%arg0: i32) -> (i32, i32) {
    %c0_i32 = arith.constant 0 : i32
    %c0_i32_0 = arith.constant 0 : i32
    return %arg0, %c0_i32 : i32, i32
  }
  func.func @transform_1(%arg0: i32) -> (i32, i32) {
    %c0_i32 = arith.constant 0 : i32
    %c0_i32_0 = arith.constant 0 : i32
    return %arg0, %c0_i32 : i32, i32
  }
  func.func @transform_2(%arg0: i32) -> (i32, i32) {
    %c0_i32 = arith.constant 0 : i32
    %c0_i32_0 = arith.constant 0 : i32
    %c0_i32_1 = arith.constant 0 : i32
    return %c0_i32, %c0_i32_0 : i32, i32
  }
  func.func @transform_3(%arg0: i32) -> (i32, i32) {
    %c0_i32 = arith.constant 0 : i32
    %c0_i32_0 = arith.constant 0 : i32
    %c0_i32_1 = arith.constant 0 : i32
    return %c0_i32, %c0_i32_0 : i32, i32
  }
  func.func @transform_4(%arg0: i32) -> (i32, i32) {
    %c0_i32 = arith.constant 0 : i32
    %c0_i32_0 = arith.constant 0 : i32
    return %arg0, %c0_i32 : i32, i32
  }
}

</mosaic_0001>

<llo_original>
// kernel: tile.8
$region0: #{tile.8}
  #allocation0 [shape = 's32[1]{0}', space=sflag, size = 0x4, scoped, tag = 'scoped memory for tile.8']
  %s0 = inlined_call_operand.vmem [shape: f32[32], index: 0, kind: input, shape index: {}]
  %s1 = inlined_call_operand.vmem [shape: f32[4,32], index: 1, kind: output, shape index: {}]
  // Predicated region
  $region2: #{tile.8} parent=0 // pred_check
    _
  $region3: #{tile.8} parent=0 // pred_check_branch
    %3 = sbr.rel (0) target = $region5
  $region4: #{tile.8} parent=0 // pred_region
    _
  $region5: #{tile.8} parent=0 // pred_fallthru
    _
  %v4 = vld [vmem:[%s0] ss:$0 sm:$0xff]
  %5 = vst [vmem:[%s1] sm:$0xf] %v4

// kernel: tile.9
$region0: #{tile.9}
  %s0 = inlined_call_operand.vmem [shape: f32[4,32], index: 0, kind: input, shape index: {}]
  %s1 = inlined_call_operand.vmem [shape: f32[1,128], index: 1, kind: output, shape index: {}]
  $region1: #{tile.9} parent=0
    #allocation0 [shape = 'u8[4096]{0}', space=vmem, size = 0x1000, scoped, tag = 'scoped mem for output reshape']
    #allocation1 [shape = 'u8[4096]{0}', space=vmem, size = 0x1000, scoped, tag = 'scoped mem for input reshape']
    %s3 = sshll.u32 1, 4
    %s4 = ssub.s32 %s3, 1
    %v5 = vld [vmem:[%s0] sm:%s4]
    %6 = vst [vmem:[#allocation1] sm:%s4] %v5
    %v7 = vld [vmem:[#allocation1] sm:$0x1]
    %vm8 = vcmask 261120
    %9 = vst.msk [vmem:[#allocation0] sm:$0x1] %vm8, %v7
    %s10 = scalar_lea.vmem [#allocation1], 3
    %v11 = vld [vmem:[%s10] sm:$0x1]
    %12 = vrot.lane.b32.xlu0 %v11, 96
    %v13 = vpop.permute.xlu0 %12
    %vm14 = vcmask 1048320
    %15 = vst.msk [vmem:[#allocation0] sm:$0x1] %vm14, %v13
    %s16 = scalar_lea.vmem [#allocation1], 2
    %v17 = vld [vmem:[%s16] sm:$0x1]
    %18 = vrot.lane.b32.xlu0 %v17, 64
    %v19 = vpop.permute.xlu0 %18
    %vm20 = vcmask 785920
    %21 = vst.msk [vmem:[#allocation0] sm:$0x1] %vm20, %v19
    %s22 = scalar_lea.vmem [#allocation1], 1
    %v23 = vld [vmem:[%s22] sm:$0x1]
    %24 = vrot.lane.b32.xlu0 %v23, 32
    %v25 = vpop.permute.xlu0 %24
    %vm26 = vcmask 523520
    %27 = vst.msk [vmem:[#allocation0] sm:$0x1] %vm26, %v25
    %s29 = sshll.u32 1, 1
    %s30 = ssub.s32 %s29, 1
    %v32 = vld [vmem:[#allocation0] sm:%s30]
    %s33 = sshll.u32 1, 1
    %s34 = ssub.s32 %s33, 1
    %35 = vst [vmem:[%s1] sm:%s34] %v32

</llo_original>
